<compile_context>
chip_gen: v7x
topology: tpu7x:2x2x1
jax: 0.10.0
libtpu: 0.0.40
codegen_flags: <defaults>
</compile_context>

<pallas_src>
import jax
import jax.numpy as jnp
from jax.experimental import pallas as pl
from jax.experimental.pallas import tpu as pltpu  # noqa: F401  (kept for TPU backend import)

# ---------------- static configuration ----------------
C_IN, H, W = 4, 16, 16            # input_shape
C_OUT, KSIZE, PAD = 8, 3, 1       # conv: out_channels, kernel, padding (stride 1)
POOL = 2                          # avg pool 2x2 stride 2
H2, W2 = H // POOL, W // POOL
FEAT = C_OUT * H2 * W2            # RNN input size = 512
IN_FLAT = C_IN * H * W            # 1024 = 8*128 (lane-dense K for the fused GEMM)
HIDDEN = 32
BATCH = 2
SEQ = 8


# ---------------- fused Pallas kernel ----------------
def rcnn_kernel(x_ref, w_all_ref, b_all_ref, w_hh_ref, o_ref):
    """Fused (pad+conv+pool+flatten+W_ih) GEMM + unrolled tanh-RNN recurrence.

    x_ref    : (S*B, C_IN*H*W)  time-major rows (n = t*B + b), NCHW-flattened images
    w_all_ref: (C_IN*H*W, HIDDEN) whole linear pipeline folded into one matrix
    b_all_ref: (1, HIDDEN)        folded bias (conv-bias path + b_ih + b_hh)
    w_hh_ref : (HIDDEN, HIDDEN)   recurrent weights
    o_ref    : (B, S*HIDDEN)      batch-first outputs, one lane-dense store
    """
    B = o_ref.shape[0]
    S = x_ref.shape[0] // B

    # One long-K MXU GEMM: (S*B, 1024) @ (1024, 32) + bias.
    xp = jnp.dot(x_ref[...], w_all_ref[...], preferred_element_type=jnp.float32)
    xp = xp + b_all_ref[...]

    # Vanilla tanh RNN, fully unrolled (static, small); h stays in registers.
    w_hh = w_hh_ref[...]
    h = jnp.tanh(xp[0:B, :])                       # h0 = 0  ->  tanh(x0)
    outs = [h]
    for t in range(1, S):
        xt = xp[t * B:(t + 1) * B, :]              # static contiguous slice
        h = jnp.tanh(xt + jnp.dot(h, w_hh, preferred_element_type=jnp.float32))
        outs.append(h)

    # Single lane-dense store: (B, S*HIDDEN) = (2, 256).
    o_ref[...] = jnp.concatenate(outs, axis=1)


# ---------------- weight folding (plain JAX, tiny, one-time per call) ----------------
def _fold_weights(w_conv, b_conv, w_ih, b_rnn):
    """Fold zero-pad + conv3x3 + 2x2 avg-pool + NCHW flatten + W_ih into one
    (C_IN*H*W, HIDDEN) matrix plus a (1, HIDDEN) bias."""
    # sel_y[yi, y2, dy] = #{py in {0,1} : yi == POOL*y2 + py + dy - PAD}  (0 or 1)
    yi = jnp.arange(H)[:, None, None]
    y2 = jnp.arange(H2)[None, :, None]
    dy = jnp.arange(KSIZE)[None, None, :]
    dfy = yi - (POOL * y2 + dy - PAD)
    sel_y = ((dfy == 0) | (dfy == 1)).astype(jnp.float32)         # (H, H2, K)

    xi = jnp.arange(W)[:, None, None]
    x2 = jnp.arange(W2)[None, :, None]
    dx = jnp.arange(KSIZE)[None, None, :]
    dfx = xi - (POOL * x2 + dx - PAD)
    sel_x = ((dfx == 0) | (dfx == 1)).astype(jnp.float32)         # (W, W2, K)

    w_ih_r = w_ih.reshape(C_OUT, H2, W2, HIDDEN)                  # (m, a, b, h)
    # cheap explicit contraction order (~8 MFLOPs total)
    t = jnp.einsum('iad,mabh->imdbh', sel_y, w_ih_r)              # (H, C_OUT, K, W2, HID)
    t = jnp.einsum('jbe,imdbh->imdjeh', sel_x, t)                 # (H, C_OUT, K, W, K, HID)
    w_all = 0.25 * jnp.einsum('decm,imdjeh->cijh', w_conv, t)     # (C_IN, H, W, HID)
    w_all = w_all.reshape(C_IN * H * W, HIDDEN)

    # conv bias survives the pool average unchanged, then goes through w_ih.
    b_all = b_rnn + jnp.einsum('m,mabh->h', b_conv.reshape(-1), w_ih_r)[None, :]
    return w_all, b_all


# ---------------- forward ----------------
def rcnn_forward(x, params):
    """x: (B, S, C_IN*H*W) batch-first, NCHW-flattened per timestep."""
    w_conv, b_conv, w_ih, w_hh, b_rnn = params
    B, S, _ = x.shape

    w_all, b_all = _fold_weights(w_conv, b_conv, w_ih, b_rnn)

    # single cheap layout op: seq-major rows so the recurrence slices contiguously
    xs = jnp.transpose(x, (1, 0, 2)).reshape(S * B, IN_FLAT)

    out2 = pl.pallas_call(
        rcnn_kernel,
        out_shape=jax.ShapeDtypeStruct((B, S * HIDDEN), jnp.float32),
        grid=(1,),                                 # single step: no per-step overhead
        in_specs=[
            pl.BlockSpec((S * B, IN_FLAT), lambda i: (0, 0)),
            pl.BlockSpec((IN_FLAT, HIDDEN), lambda i: (0, 0)),
            pl.BlockSpec((1, HIDDEN), lambda i: (0, 0)),
            pl.BlockSpec((HIDDEN, HIDDEN), lambda i: (0, 0)),
        ],
        out_specs=pl.BlockSpec((B, S * HIDDEN), lambda i: (0, 0)),
    )(xs, w_all, b_all, w_hh)

    out = out2.reshape(B, S, HIDDEN)               # contiguous reshape, free
    hidden = out[:, -1, :][None]                   # (n_layers=1, B, HIDDEN)
    return out, hidden


# ---------------- pure-JAX reference (same semantics) ----------------
def rcnn_reference(x, params):
    w_conv, b_conv, w_ih, w_hh, b_rnn = params
    B, S, _ = x.shape
    N = S * B
    xs = jnp.transpose(x, (1, 0, 2)).reshape(N, C_IN, H, W)
    xs = jnp.transpose(xs, (0, 2, 3, 1))                                  # NHWC
    xpad = jnp.pad(xs, ((0, 0), (PAD, PAD), (PAD, PAD), (0, 0)))
    conv = jnp.zeros((N, H, W, C_OUT), jnp.float32) + b_conv.reshape(1, 1, 1, C_OUT)
    for i in range(KSIZE):
        for j in range(KSIZE):
            conv = conv + jnp.einsum('nhwc,cd->nhwd',
                                     xpad[:, i:i + H, j:j + W, :], w_conv[i, j])
    pool = 0.25 * (conv[:, 0::2, 0::2] + conv[:, 0::2, 1::2]
                   + conv[:, 1::2, 0::2] + conv[:, 1::2, 1::2])
    feats = jnp.transpose(pool, (0, 3, 1, 2)).reshape(N, FEAT)            # NCHW flatten
    xproj = feats @ w_ih + b_rnn

    def step(h, xt):
        h = jnp.tanh(xt + h @ w_hh)
        return h, h

    _, outs = jax.lax.scan(step, jnp.zeros((B, HIDDEN), jnp.float32),
                           xproj.reshape(S, B, HIDDEN))
    return jnp.transpose(outs, (1, 0, 2)), outs[-1][None]


def init_params(key):
    k0, k1, k2, k3, k4 = jax.random.split(key, 5)
    w_conv = 0.1 * jax.random.normal(k0, (KSIZE, KSIZE, C_IN, C_OUT), jnp.float32)
    b_conv = 0.1 * jax.random.normal(k1, (1, C_OUT), jnp.float32)
    w_ih = 0.05 * jax.random.normal(k2, (FEAT, HIDDEN), jnp.float32)   # rows: NCHW feat order
    w_hh = 0.05 * jax.random.normal(k3, (HIDDEN, HIDDEN), jnp.float32)
    b_rnn = 0.05 * jax.random.normal(k4, (1, HIDDEN), jnp.float32)     # b_ih + b_hh combined
    return (w_conv, b_conv, w_ih, w_hh, b_rnn)


if __name__ == "__main__":
    key = jax.random.PRNGKey(0)
    pkey, xkey = jax.random.split(key)
    params = init_params(pkey)
    x = jax.random.normal(xkey, (BATCH, SEQ, C_IN * H * W), jnp.float32)

    out, hidden = jax.jit(rcnn_forward)(x, params)
    jax.block_until_ready((out, hidden))
    assert out.shape == (BATCH, SEQ, HIDDEN)
    assert hidden.shape == (1, BATCH, HIDDEN)

    ref_out, ref_hidden = jax.jit(rcnn_reference)(x, params)
    jax.block_until_ready((ref_out, ref_hidden))
    assert jnp.allclose(out, ref_out, atol=2e-3, rtol=2e-3), \
        float(jnp.max(jnp.abs(out - ref_out)))
    assert jnp.allclose(hidden, ref_hidden, atol=2e-3, rtol=2e-3)
    print("KERNEL_OK")
</pallas_src>

<mosaic_0001>
module attributes {stable_mosaic.version = 11 : i64} {
  func.func @rcnn_kernel(%arg0: i32, %arg1: memref<16x1024xf32, #tpu.memory_space<vmem>>, %arg2: memref<1024x32xf32, #tpu.memory_space<vmem>>, %arg3: memref<1x32xf32, #tpu.memory_space<vmem>>, %arg4: memref<32x32xf32, #tpu.memory_space<vmem>>, %arg5: memref<2x256xf32, #tpu.memory_space<vmem>>) attributes {dimension_semantics = [#tpu.dimension_semantics<arbitrary>], iteration_bounds = array<i64: 1>, scalar_prefetch = 0 : i64, scratch_operands = 0 : i64, tpu.core_type = #tpu.core_type<tc>, window_params = [{pipeline_mode = #tpu.pipeline_mode<synchronous>, transform_indices = @transform_0, window_bounds = array<i64: 16, 1024>}, {pipeline_mode = #tpu.pipeline_mode<synchronous>, transform_indices = @transform_1, window_bounds = array<i64: 1024, 32>}, {pipeline_mode = #tpu.pipeline_mode<synchronous>, transform_indices = @transform_2, window_bounds = array<i64: 1, 32>}, {pipeline_mode = #tpu.pipeline_mode<synchronous>, transform_indices = @transform_3, window_bounds = array<i64: 32, 32>}, {pipeline_mode = #tpu.pipeline_mode<synchronous>, transform_indices = @transform_4, window_bounds = array<i64: 2, 256>}]} {
    %c0 = arith.constant 0 : index
    %c0_0 = arith.constant 0 : index
    %0 = vector.load %arg1[%c0, %c0_0] : memref<16x1024xf32, #tpu.memory_space<vmem>>, vector<16x1024xf32>
    %c0_1 = arith.constant 0 : index
    %c0_2 = arith.constant 0 : index
    %1 = vector.load %arg2[%c0_1, %c0_2] : memref<1024x32xf32, #tpu.memory_space<vmem>>, vector<1024x32xf32>
    %cst = arith.constant dense<0.000000e+00> : vector<16x32xf32>
    %2 = tpu.matmul %0, %1, %cst {dimension_numbers = #tpu.dot_dimension_numbers<[1], [0], [0], [1], [0, 0, 1, 1], [], []>} : vector<16x1024xf32>, vector<1024x32xf32>, vector<16x32xf32> -> vector<16x32xf32>
    %c0_3 = arith.constant 0 : index
    %c0_4 = arith.constant 0 : index
    %3 = vector.load %arg3[%c0_3, %c0_4] : memref<1x32xf32, #tpu.memory_space<vmem>>, vector<1x32xf32>
    %4 = vector.broadcast %3 : vector<1x32xf32> to vector<16x32xf32>
    %5 = arith.addf %2, %4 : vector<16x32xf32>
    %c0_5 = arith.constant 0 : index
    %c0_6 = arith.constant 0 : index
    %6 = vector.load %arg4[%c0_5, %c0_6] : memref<32x32xf32, #tpu.memory_space<vmem>>, vector<32x32xf32>
    %7 = vector.extract_strided_slice %5 {offsets = [0, 0], sizes = [2, 32], strides = [1, 1]} : vector<16x32xf32> to vector<2x32xf32>
    %8 = math.tanh %7 : vector<2x32xf32>
    %9 = vector.extract_strided_slice %5 {offsets = [2, 0], sizes = [2, 32], strides = [1, 1]} : vector<16x32xf32> to vector<2x32xf32>
    %cst_7 = arith.constant dense<0.000000e+00> : vector<2x32xf32>
    %10 = tpu.matmul %8, %6, %cst_7 {dimension_numbers = #tpu.dot_dimension_numbers<[1], [0], [0], [1], [0, 0, 1, 1], [], []>} : vector<2x32xf32>, vector<32x32xf32>, vector<2x32xf32> -> vector<2x32xf32>
    %11 = arith.addf %9, %10 : vector<2x32xf32>
    %12 = math.tanh %11 : vector<2x32xf32>
    %13 = vector.extract_strided_slice %5 {offsets = [4, 0], sizes = [2, 32], strides = [1, 1]} : vector<16x32xf32> to vector<2x32xf32>
    %cst_8 = arith.constant dense<0.000000e+00> : vector<2x32xf32>
    %14 = tpu.matmul %12, %6, %cst_8 {dimension_numbers = #tpu.dot_dimension_numbers<[1], [0], [0], [1], [0, 0, 1, 1], [], []>} : vector<2x32xf32>, vector<32x32xf32>, vector<2x32xf32> -> vector<2x32xf32>
    %15 = arith.addf %13, %14 : vector<2x32xf32>
    %16 = math.tanh %15 : vector<2x32xf32>
    %17 = vector.extract_strided_slice %5 {offsets = [6, 0], sizes = [2, 32], strides = [1, 1]} : vector<16x32xf32> to vector<2x32xf32>
    %cst_9 = arith.constant dense<0.000000e+00> : vector<2x32xf32>
    %18 = tpu.matmul %16, %6, %cst_9 {dimension_numbers = #tpu.dot_dimension_numbers<[1], [0], [0], [1], [0, 0, 1, 1], [], []>} : vector<2x32xf32>, vector<32x32xf32>, vector<2x32xf32> -> vector<2x32xf32>
    %19 = arith.addf %17, %18 : vector<2x32xf32>
    %20 = math.tanh %19 : vector<2x32xf32>
    %21 = vector.extract_strided_slice %5 {offsets = [8, 0], sizes = [2, 32], strides = [1, 1]} : vector<16x32xf32> to vector<2x32xf32>
    %cst_10 = arith.constant dense<0.000000e+00> : vector<2x32xf32>
    %22 = tpu.matmul %20, %6, %cst_10 {dimension_numbers = #tpu.dot_dimension_numbers<[1], [0], [0], [1], [0, 0, 1, 1], [], []>} : vector<2x32xf32>, vector<32x32xf32>, vector<2x32xf32> -> vector<2x32xf32>
    %23 = arith.addf %21, %22 : vector<2x32xf32>
    %24 = math.tanh %23 : vector<2x32xf32>
    %25 = vector.extract_strided_slice %5 {offsets = [10, 0], sizes = [2, 32], strides = [1, 1]} : vector<16x32xf32> to vector<2x32xf32>
    %cst_11 = arith.constant dense<0.000000e+00> : vector<2x32xf32>
    %26 = tpu.matmul %24, %6, %cst_11 {dimension_numbers = #tpu.dot_dimension_numbers<[1], [0], [0], [1], [0, 0, 1, 1], [], []>} : vector<2x32xf32>, vector<32x32xf32>, vector<2x32xf32> -> vector<2x32xf32>
    %27 = arith.addf %25, %26 : vector<2x32xf32>
    %28 = math.tanh %27 : vector<2x32xf32>
    %29 = vector.extract_strided_slice %5 {offsets = [12, 0], sizes = [2, 32], strides = [1, 1]} : vector<16x32xf32> to vector<2x32xf32>
    %cst_12 = arith.constant dense<0.000000e+00> : vector<2x32xf32>
    %30 = tpu.matmul %28, %6, %cst_12 {dimension_numbers = #tpu.dot_dimension_numbers<[1], [0], [0], [1], [0, 0, 1, 1], [], []>} : vector<2x32xf32>, vector<32x32xf32>, vector<2x32xf32> -> vector<2x32xf32>
    %31 = arith.addf %29, %30 : vector<2x32xf32>
    %32 = math.tanh %31 : vector<2x32xf32>
    %33 = vector.extract_strided_slice %5 {offsets = [14, 0], sizes = [2, 32], strides = [1, 1]} : vector<16x32xf32> to vector<2x32xf32>
    %cst_13 = arith.constant dense<0.000000e+00> : vector<2x32xf32>
    %34 = tpu.matmul %32, %6, %cst_13 {dimension_numbers = #tpu.dot_dimension_numbers<[1], [0], [0], [1], [0, 0, 1, 1], [], []>} : vector<2x32xf32>, vector<32x32xf32>, vector<2x32xf32> -> vector<2x32xf32>
    %35 = arith.addf %33, %34 : vector<2x32xf32>
    %36 = math.tanh %35 : vector<2x32xf32>
    %37 = tpu.concatenate %8, %12, %16, %20, %24, %28, %32, %36 in 1 : vector<2x32xf32>, vector<2x32xf32>, vector<2x32xf32>, vector<2x32xf32>, vector<2x32xf32>, vector<2x32xf32>, vector<2x32xf32>, vector<2x32xf32> -> vector<2x256xf32>
    %c0_14 = arith.constant 0 : index
    %c0_15 = arith.constant 0 : index
    %38 = vector.load %arg5[%c0_14, %c0_15] : memref<2x256xf32, #tpu.memory_space<vmem>>, vector<2x256xf32>
    tpu.vector_store %arg5[%c0_14, %c0_15], %37 {strides = array<i32>} : memref<2x256xf32, #tpu.memory_space<vmem>>, vector<2x256xf32>,
    return
  }
  func.func @transform_0(%arg0: i32) -> (i32, i32) {
    %c0_i32 = arith.constant 0 : i32
    %c0_i32_0 = arith.constant 0 : i32
    %c0_i32_1 = arith.constant 0 : i32
    return %c0_i32, %c0_i32_0 : i32, i32
  }
  func.func @transform_1(%arg0: i32) -> (i32, i32) {
    %c0_i32 = arith.constant 0 : i32
    %c0_i32_0 = arith.constant 0 : i32
    %c0_i32_1 = arith.constant 0 : i32
    return %c0_i32, %c0_i32_0 : i32, i32
  }
  func.func @transform_2(%arg0: i32) -> (i32, i32) {
    %c0_i32 = arith.constant 0 : i32
    %c0_i32_0 = arith.constant 0 : i32
    %c0_i32_1 = arith.constant 0 : i32
    return %c0_i32, %c0_i32_0 : i32, i32
  }
  func.func @transform_3(%arg0: i32) -> (i32, i32) {
    %c0_i32 = arith.constant 0 : i32
    %c0_i32_0 = arith.constant 0 : i32
    %c0_i32_1 = arith.constant 0 : i32
    return %c0_i32, %c0_i32_0 : i32, i32
  }
  func.func @transform_4(%arg0: i32) -> (i32, i32) {
    %c0_i32 = arith.constant 0 : i32
    %c0_i32_0 = arith.constant 0 : i32
    %c0_i32_1 = arith.constant 0 : i32
    return %c0_i32, %c0_i32_0 : i32, i32
  }
}

</mosaic_0001>

<llo_original>
// kernel: rcnn_forward.1
$region0: #{rcnn_forward.1}
  #allocation0 [shape = 'u32[]', space=smem, size = 0x4, offset = 0x4, fixed_abs, tag = 'smem constant byte address 0x4 - core index']
  #allocation1 [shape = 'u32[144,128]{1,0:T(1,128)}', space=vmem, size = 0x12000, scoped, tag = 'internal scratch']
  %s0 = inlined_call_operand.vmem [shape: f32[16,1024], index: 0, kind: input, shape index: {}]
  %s1 = inlined_call_operand.vmem [shape: f32[1024,32], index: 1, kind: input, shape index: {}]
  %s2 = inlined_call_operand.vmem [shape: f32[1,32], index: 2, kind: input, shape index: {}]
  %s3 = inlined_call_operand.vmem [shape: f32[32,32], index: 3, kind: input, shape index: {}]
  %s4 = inlined_call_operand.vmem [shape: f32[2,256], index: 4, kind: output, shape index: {}]
  %s5 = sld [smem:[#allocation0]]
  $region26: #{rcnn_forward.1} parent=0
    _
  %s7 = ssub.s32 1, %s5
  %s8 = scalar_select 0, %s7, %s5
  // Predicated region
  $region2: #{rcnn_forward.1} parent=0 // pred_check
    _
  $region3: #{rcnn_forward.1} parent=0 // pred_check_branch
    %10 = sbr.rel (0) target = $region5
  $region4: #{rcnn_forward.1} parent=0 // pred_region
    _
  $region5: #{rcnn_forward.1} parent=0 // pred_fallthru
    _
  // Predicated region
  $region6: #{rcnn_forward.1} parent=0 // pred_check
    _
  $region7: #{rcnn_forward.1} parent=0 // pred_check_branch
    %12 = sbr.rel (0) target = $region9
  $region8: #{rcnn_forward.1} parent=0 // pred_region
    _
  $region9: #{rcnn_forward.1} parent=0 // pred_fallthru
    _
  // Predicated region
  $region10: #{rcnn_forward.1} parent=0 // pred_check
    _
  $region11: #{rcnn_forward.1} parent=0 // pred_check_branch
    %14 = sbr.rel (0) target = $region13
  $region12: #{rcnn_forward.1} parent=0 // pred_region
    _
  $region13: #{rcnn_forward.1} parent=0 // pred_fallthru
    _
  // Predicated region
  $region14: #{rcnn_forward.1} parent=0 // pred_check
    _
  $region15: #{rcnn_forward.1} parent=0 // pred_check_branch
    %16 = sbr.rel (0) target = $region17
  $region16: #{rcnn_forward.1} parent=0 // pred_region
    _
  $region17: #{rcnn_forward.1} parent=0 // pred_fallthru
    _
  %v17 = vld [vmem:[%s0] sm:$0xff]
  %v18 = vld [vmem:[%s0 + $0x8] sm:$0xff]
  %v19 = vld [vmem:[%s0 + $0x10] sm:$0xff]
  %v20 = vld [vmem:[%s0 + $0x18] sm:$0xff]
  %v21 = vld [vmem:[%s0 + $0x20] sm:$0xff]
  %v22 = vld [vmem:[%s0 + $0x28] sm:$0xff]
  %v23 = vld [vmem:[%s0 + $0x30] sm:$0xff]
  %v24 = vld [vmem:[%s0 + $0x38] sm:$0xff]
  %v25 = vld [vmem:[%s0 + $0x40] sm:$0xff]
  %v26 = vld [vmem:[%s0 + $0x48] sm:$0xff]
  %v27 = vld [vmem:[%s0 + $0x50] sm:$0xff]
  %v28 = vld [vmem:[%s0 + $0x58] sm:$0xff]
  %v29 = vld [vmem:[%s0 + $0x60] sm:$0xff]
  %v30 = vld [vmem:[%s0 + $0x68] sm:$0xff]
  %v31 = vld [vmem:[%s0 + $0x70] sm:$0xff]
  %v32 = vld [vmem:[%s0 + $0x78] sm:$0xff]
  %v33 = vld [vmem:[%s1] sm:$0xff]
  %v34 = vld [vmem:[%s1 + $0x8] sm:$0xff]
  %v35 = vld [vmem:[%s1 + $0x10] sm:$0xff]
  %v36 = vld [vmem:[%s1 + $0x18] sm:$0xff]
  %v37 = vld [vmem:[%s1 + $0x20] sm:$0xff]
  %v38 = vld [vmem:[%s1 + $0x28] sm:$0xff]
  %v39 = vld [vmem:[%s1 + $0x30] sm:$0xff]
  %v40 = vld [vmem:[%s1 + $0x38] sm:$0xff]
  %v41 = vld [vmem:[%s1 + $0x40] sm:$0xff]
  %v42 = vld [vmem:[%s1 + $0x48] sm:$0xff]
  %v43 = vld [vmem:[%s1 + $0x50] sm:$0xff]
  %v44 = vld [vmem:[%s1 + $0x58] sm:$0xff]
  %v45 = vld [vmem:[%s1 + $0x60] sm:$0xff]
  %v46 = vld [vmem:[%s1 + $0x68] sm:$0xff]
  %v47 = vld [vmem:[%s1 + $0x70] sm:$0xff]
  %v48 = vld [vmem:[%s1 + $0x78] sm:$0xff]
  %v49 = vld [vmem:[%s1 + $0x80] sm:$0xff]
  %v50 = vld [vmem:[%s1 + $0x88] sm:$0xff]
  %v51 = vld [vmem:[%s1 + $0x90] sm:$0xff]
  %v52 = vld [vmem:[%s1 + $0x98] sm:$0xff]
  %v53 = vld [vmem:[%s1 + $0xa0] sm:$0xff]
  %v54 = vld [vmem:[%s1 + $0xa8] sm:$0xff]
  %v55 = vld [vmem:[%s1 + $0xb0] sm:$0xff]
  %v56 = vld [vmem:[%s1 + $0xb8] sm:$0xff]
  %v57 = vld [vmem:[%s1 + $0xc0] sm:$0xff]
  %v58 = vld [vmem:[%s1 + $0xc8] sm:$0xff]
  %v59 = vld [vmem:[%s1 + $0xd0] sm:$0xff]
  %v60 = vld [vmem:[%s1 + $0xd8] sm:$0xff]
  %v61 = vld [vmem:[%s1 + $0xe0] sm:$0xff]
  %v62 = vld [vmem:[%s1 + $0xe8] sm:$0xff]
  %v63 = vld [vmem:[%s1 + $0xf0] sm:$0xff]
  %v64 = vld [vmem:[%s1 + $0xf8] sm:$0xff]
  %v65 = vld [vmem:[%s1 + $0x100] sm:$0xff]
  %v66 = vld [vmem:[%s1 + $0x108] sm:$0xff]
  %v67 = vld [vmem:[%s1 + $0x110] sm:$0xff]
  %v68 = vld [vmem:[%s1 + $0x118] sm:$0xff]
  %v69 = vld [vmem:[%s1 + $0x120] sm:$0xff]
  %v70 = vld [vmem:[%s1 + $0x128] sm:$0xff]
  %v71 = vld [vmem:[%s1 + $0x130] sm:$0xff]
  %v72 = vld [vmem:[%s1 + $0x138] sm:$0xff]
  %v73 = vld [vmem:[%s1 + $0x140] sm:$0xff]
  %v74 = vld [vmem:[%s1 + $0x148] sm:$0xff]
  %v75 = vld [vmem:[%s1 + $0x150] sm:$0xff]
  %v76 = vld [vmem:[%s1 + $0x158] sm:$0xff]
  %v77 = vld [vmem:[%s1 + $0x160] sm:$0xff]
  %v78 = vld [vmem:[%s1 + $0x168] sm:$0xff]
  %v79 = vld [vmem:[%s1 + $0x170] sm:$0xff]
  %v80 = vld [vmem:[%s1 + $0x178] sm:$0xff]
  %v81 = vld [vmem:[%s1 + $0x180] sm:$0xff]
  %v82 = vld [vmem:[%s1 + $0x188] sm:$0xff]
  %v83 = vld [vmem:[%s1 + $0x190] sm:$0xff]
  %v84 = vld [vmem:[%s1 + $0x198] sm:$0xff]
  %v85 = vld [vmem:[%s1 + $0x1a0] sm:$0xff]
  %v86 = vld [vmem:[%s1 + $0x1a8] sm:$0xff]
  %v87 = vld [vmem:[%s1 + $0x1b0] sm:$0xff]
  %v88 = vld [vmem:[%s1 + $0x1b8] sm:$0xff]
  %v89 = vld [vmem:[%s1 + $0x1c0] sm:$0xff]
  %v90 = vld [vmem:[%s1 + $0x1c8] sm:$0xff]
  %v91 = vld [vmem:[%s1 + $0x1d0] sm:$0xff]
  %v92 = vld [vmem:[%s1 + $0x1d8] sm:$0xff]
  %v93 = vld [vmem:[%s1 + $0x1e0] sm:$0xff]
  %v94 = vld [vmem:[%s1 + $0x1e8] sm:$0xff]
  %v95 = vld [vmem:[%s1 + $0x1f0] sm:$0xff]
  %v96 = vld [vmem:[%s1 + $0x1f8] sm:$0xff]
  %v97 = vld [vmem:[%s1 + $0x200] sm:$0xff]
  %v98 = vld [vmem:[%s1 + $0x208] sm:$0xff]
  %v99 = vld [vmem:[%s1 + $0x210] sm:$0xff]
  %v100 = vld [vmem:[%s1 + $0x218] sm:$0xff]
  %v101 = vld [vmem:[%s1 + $0x220] sm:$0xff]
  %v102 = vld [vmem:[%s1 + $0x228] sm:$0xff]
  %v103 = vld [vmem:[%s1 + $0x230] sm:$0xff]
  %v104 = vld [vmem:[%s1 + $0x238] sm:$0xff]
  %v105 = vld [vmem:[%s1 + $0x240] sm:$0xff]
  %v106 = vld [vmem:[%s1 + $0x248] sm:$0xff]
  %v107 = vld [vmem:[%s1 + $0x250] sm:$0xff]
  %v108 = vld [vmem:[%s1 + $0x258] sm:$0xff]
  %v109 = vld [vmem:[%s1 + $0x260] sm:$0xff]
  %v110 = vld [vmem:[%s1 + $0x268] sm:$0xff]
  %v111 = vld [vmem:[%s1 + $0x270] sm:$0xff]
  %v112 = vld [vmem:[%s1 + $0x278] sm:$0xff]
  %v113 = vld [vmem:[%s1 + $0x280] sm:$0xff]
  %v114 = vld [vmem:[%s1 + $0x288] sm:$0xff]
  %v115 = vld [vmem:[%s1 + $0x290] sm:$0xff]
  %v116 = vld [vmem:[%s1 + $0x298] sm:$0xff]
  %v117 = vld [vmem:[%s1 + $0x2a0] sm:$0xff]
  %v118 = vld [vmem:[%s1 + $0x2a8] sm:$0xff]
  %v119 = vld [vmem:[%s1 + $0x2b0] sm:$0xff]
  %v120 = vld [vmem:[%s1 + $0x2b8] sm:$0xff]
  %v121 = vld [vmem:[%s1 + $0x2c0] sm:$0xff]
  %v122 = vld [vmem:[%s1 + $0x2c8] sm:$0xff]
  %v123 = vld [vmem:[%s1 + $0x2d0] sm:$0xff]
  %v124 = vld [vmem:[%s1 + $0x2d8] sm:$0xff]
  %v125 = vld [vmem:[%s1 + $0x2e0] sm:$0xff]
  %v126 = vld [vmem:[%s1 + $0x2e8] sm:$0xff]
  %v127 = vld [vmem:[%s1 + $0x2f0] sm:$0xff]
  %v128 = vld [vmem:[%s1 + $0x2f8] sm:$0xff]
  %v129 = vld [vmem:[%s1 + $0x300] sm:$0xff]
  %v130 = vld [vmem:[%s1 + $0x308] sm:$0xff]
  %v131 = vld [vmem:[%s1 + $0x310] sm:$0xff]
  %v132 = vld [vmem:[%s1 + $0x318] sm:$0xff]
  %v133 = vld [vmem:[%s1 + $0x320] sm:$0xff]
  %v134 = vld [vmem:[%s1 + $0x328] sm:$0xff]
  %v135 = vld [vmem:[%s1 + $0x330] sm:$0xff]
  %v136 = vld [vmem:[%s1 + $0x338] sm:$0xff]
  %v137 = vld [vmem:[%s1 + $0x340] sm:$0xff]
  %v138 = vld [vmem:[%s1 + $0x348] sm:$0xff]
  %v139 = vld [vmem:[%s1 + $0x350] sm:$0xff]
  %v140 = vld [vmem:[%s1 + $0x358] sm:$0xff]
  %v141 = vld [vmem:[%s1 + $0x360] sm:$0xff]
  %v142 = vld [vmem:[%s1 + $0x368] sm:$0xff]
  %v143 = vld [vmem:[%s1 + $0x370] sm:$0xff]
  %v144 = vld [vmem:[%s1 + $0x378] sm:$0xff]
  %v145 = vld [vmem:[%s1 + $0x380] sm:$0xff]
  %v146 = vld [vmem:[%s1 + $0x388] sm:$0xff]
  %v147 = vld [vmem:[%s1 + $0x390] sm:$0xff]
  %v148 = vld [vmem:[%s1 + $0x398] sm:$0xff]
  %v149 = vld [vmem:[%s1 + $0x3a0] sm:$0xff]
  %v150 = vld [vmem:[%s1 + $0x3a8] sm:$0xff]
  %v151 = vld [vmem:[%s1 + $0x3b0] sm:$0xff]
  %v152 = vld [vmem:[%s1 + $0x3b8] sm:$0xff]
  %v153 = vld [vmem:[%s1 + $0x3c0] sm:$0xff]
  %v154 = vld [vmem:[%s1 + $0x3c8] sm:$0xff]
  %v155 = vld [vmem:[%s1 + $0x3d0] sm:$0xff]
  %v156 = vld [vmem:[%s1 + $0x3d8] sm:$0xff]
  %v157 = vld [vmem:[%s1 + $0x3e0] sm:$0xff]
  %v158 = vld [vmem:[%s1 + $0x3e8] sm:$0xff]
  %v159 = vld [vmem:[%s1 + $0x3f0] sm:$0xff]
  %v160 = vld [vmem:[%s1 + $0x3f8] sm:$0xff]
  %v161 = vld [vmem:[%s2] sm:$0x1]
  %v163 = vlaneseq
  %v164 = vshrl.u32 %v163, 7
  %v165 = vsub.s32 0, %v164
  %v166 = vrot.slane %v161, %v165
  %168 = vmatprep.subr.mxu0 0.0
  %169 = vmatpush1.msra.mxu0 %v33
  %170 = vmatprep.subr.mxu0 0.0
  %171 = vmatpush1.msra.mxu0 %v34
  %172 = vmatprep.subr.mxu0 0.0
  %173 = vmatpush1.msra.mxu0 %v35
  %174 = vmatprep.subr.mxu0 0.0
  %175 = vmatpush1.msra.mxu0 %v36
  %176 = vmatprep.subr.mxu0 0.0
  %177 = vmatpush1.msra.mxu0 %v37
  %178 = vmatprep.subr.mxu0 0.0
  %179 = vmatpush1.msra.mxu0 %v38
  %180 = vmatprep.subr.mxu0 0.0
  %181 = vmatpush1.msra.mxu0 %v39
  %182 = vmatprep.subr.mxu0 0.0
  %183 = vmatpush1.msra.mxu0 %v40
  %184 = vmatprep.subr.mxu0 0.0
  %185 = vmatpush1.msra.mxu0 %v41
  %186 = vmatprep.subr.mxu0 0.0
  %187 = vmatpush1.msra.mxu0 %v42
  %188 = vmatprep.subr.mxu0 0.0
  %189 = vmatpush1.msra.mxu0 %v43
  %190 = vmatprep.subr.mxu0 0.0
  %191 = vmatpush1.msra.mxu0 %v44
  %192 = vmatprep.subr.mxu0 0.0
  %193 = vmatpush1.msra.mxu0 %v45
  %194 = vmatprep.subr.mxu0 0.0
  %195 = vmatpush1.msra.mxu0 %v46
  %196 = vmatprep.subr.mxu0 0.0
  %197 = vmatpush1.msra.mxu0 %v47
  %198 = vmatprep.subr.mxu0 0.0
  %199 = vmatpush1.msra.mxu0 %v48
  %200 = vmatprep.subr.mxu0 0.0
  %201 = vmatpush1.msra.mxu0 %v49
  %202 = vmatprep.subr.mxu0 0.0
  %203 = vmatpush1.msra.mxu0 %v50
  %204 = vmatprep.subr.mxu0 0.0
  %205 = vmatpush1.msra.mxu0 %v51
  %206 = vmatprep.subr.mxu0 0.0
  %207 = vmatpush1.msra.mxu0 %v52
  %208 = vmatprep.subr.mxu0 0.0
  %209 = vmatpush1.msra.mxu0 %v53
  %210 = vmatprep.subr.mxu0 0.0
  %211 = vmatpush1.msra.mxu0 %v54
  %212 = vmatprep.subr.mxu0 0.0
  %213 = vmatpush1.msra.mxu0 %v55
  %214 = vmatprep.subr.mxu0 0.0
  %215 = vmatpush1.msra.mxu0 %v56
  %216 = vmatprep.subr.mxu0 0.0
  %217 = vmatpush1.msra.mxu0 %v57
  %218 = vmatprep.subr.mxu0 0.0
  %219 = vmatpush1.msra.mxu0 %v58
  %220 = vmatprep.subr.mxu0 0.0
  %221 = vmatpush1.msra.mxu0 %v59
  %222 = vmatprep.subr.mxu0 0.0
  %223 = vmatpush1.msra.mxu0 %v60
  %224 = vmatprep.subr.mxu0 0.0
  %225 = vmatpush1.msra.mxu0 %v61
  %226 = vmatprep.subr.mxu0 0.0
  %227 = vmatpush1.msra.mxu0 %v62
  %228 = vmatprep.subr.mxu0 0.0
  %229 = vmatpush1.msra.mxu0 %v63
  %230 = vmatprep.subr.mxu0 0.0
  %231 = vmatpush1.msra.mxu0 %v64
  %232 = vmatprep.mubr.f32.mxu0 %v18
  %233 = vmatmul.mubr.f32.gmra.mrb[0].mxu0 %v17
  %v234 = vpop.f32.mrb[0].mxu0
  %v235 = vadd.f32 %v166, %v234
  %v236 = vpop.f32.mrb[0].mxu0
  %237 = vmatprep.mubr.f32.mxu0 %v26
  %238 = vmatmul.mubr.f32.gmra.mrb[0].mxu0 %v25
  %v239 = vpop.f32.mrb[0].mxu0
  %v240 = vadd.f32 %v166, %v239
  %v241 = vpop.f32.mrb[0].mxu0
  %242 = vdwg.mxu0
  %243 = vmatprep.subr.mxu0 0.0
  %244 = vmatpush1.msra.mxu0 %v65
  %245 = vmatprep.subr.mxu0 0.0
  %246 = vmatpush1.msra.mxu0 %v66
  %247 = vmatprep.subr.mxu0 0.0
  %248 = vmatpush1.msra.mxu0 %v67
  %249 = vmatprep.subr.mxu0 0.0
  %250 = vmatpush1.msra.mxu0 %v68
  %251 = vmatprep.subr.mxu0 0.0
  %252 = vmatpush1.msra.mxu0 %v69
  %253 = vmatprep.subr.mxu0 0.0
  %254 = vmatpush1.msra.mxu0 %v70
  %255 = vmatprep.subr.mxu0 0.0
  %256 = vmatpush1.msra.mxu0 %v71
  %257 = vmatprep.subr.mxu0 0.0
  %258 = vmatpush1.msra.mxu0 %v72
  %259 = vmatprep.subr.mxu0 0.0
  %260 = vmatpush1.msra.mxu0 %v73
  %261 = vmatprep.subr.mxu0 0.0
  %262 = vmatpush1.msra.mxu0 %v74
  %263 = vmatprep.subr.mxu0 0.0
  %264 = vmatpush1.msra.mxu0 %v75
  %265 = vmatprep.subr.mxu0 0.0
  %266 = vmatpush1.msra.mxu0 %v76
  %267 = vmatprep.subr.mxu0 0.0
  %268 = vmatpush1.msra.mxu0 %v77
  %269 = vmatprep.subr.mxu0 0.0
  %270 = vmatpush1.msra.mxu0 %v78
  %271 = vmatprep.subr.mxu0 0.0
  %272 = vmatpush1.msra.mxu0 %v79
  %273 = vmatprep.subr.mxu0 0.0
  %274 = vmatpush1.msra.mxu0 %v80
  %275 = vmatprep.subr.mxu0 0.0
  %276 = vmatpush1.msra.mxu0 %v81
  %277 = vmatprep.subr.mxu0 0.0
  %278 = vmatpush1.msra.mxu0 %v82
  %279 = vmatprep.subr.mxu0 0.0
  %280 = vmatpush1.msra.mxu0 %v83
  %281 = vmatprep.subr.mxu0 0.0
  %282 = vmatpush1.msra.mxu0 %v84
  %283 = vmatprep.subr.mxu0 0.0
  %284 = vmatpush1.msra.mxu0 %v85
  %285 = vmatprep.subr.mxu0 0.0
  %286 = vmatpush1.msra.mxu0 %v86
  %287 = vmatprep.subr.mxu0 0.0
  %288 = vmatpush1.msra.mxu0 %v87
  %289 = vmatprep.subr.mxu0 0.0
  %290 = vmatpush1.msra.mxu0 %v88
  %291 = vmatprep.subr.mxu0 0.0
  %292 = vmatpush1.msra.mxu0 %v89
  %293 = vmatprep.subr.mxu0 0.0
  %294 = vmatpush1.msra.mxu0 %v90
  %295 = vmatprep.subr.mxu0 0.0
  %296 = vmatpush1.msra.mxu0 %v91
  %297 = vmatprep.subr.mxu0 0.0
  %298 = vmatpush1.msra.mxu0 %v92
  %299 = vmatprep.subr.mxu0 0.0
  %300 = vmatpush1.msra.mxu0 %v93
  %301 = vmatprep.subr.mxu0 0.0
  %302 = vmatpush1.msra.mxu0 %v94
  %303 = vmatprep.subr.mxu0 0.0
  %304 = vmatpush1.msra.mxu0 %v95
  %305 = vmatprep.subr.mxu0 0.0
  %306 = vmatpush1.msra.mxu0 %v96
  %307 = vmatprep.mubr.f32.mxu0 %v20
  %308 = vmatmul.mubr.f32.gmra.mrb[0].mxu0 %v19
  %v309 = vpop.f32.mrb[0].mxu0
  %v310 = vadd.f32 %v235, %v309
  %v311 = vpop.f32.mrb[0].mxu0
  %312 = vmatprep.mubr.f32.mxu0 %v28
  %313 = vmatmul.mubr.f32.gmra.mrb[0].mxu0 %v27
  %v314 = vpop.f32.mrb[0].mxu0
  %v315 = vadd.f32 %v240, %v314
  %v316 = vpop.f32.mrb[0].mxu0
  %317 = vdwg.mxu0
  %318 = vmatprep.subr.mxu0 0.0
  %319 = vmatpush1.msra.mxu0 %v97
  %320 = vmatprep.subr.mxu0 0.0
  %321 = vmatpush1.msra.mxu0 %v98
  %322 = vmatprep.subr.mxu0 0.0
  %323 = vmatpush1.msra.mxu0 %v99
  %324 = vmatprep.subr.mxu0 0.0
  %325 = vmatpush1.msra.mxu0 %v100
  %326 = vmatprep.subr.mxu0 0.0
  %327 = vmatpush1.msra.mxu0 %v101
  %328 = vmatprep.subr.mxu0 0.0
  %329 = vmatpush1.msra.mxu0 %v102
  %330 = vmatprep.subr.mxu0 0.0
  %331 = vmatpush1.msra.mxu0 %v103
  %332 = vmatprep.subr.mxu0 0.0
  %333 = vmatpush1.msra.mxu0 %v104
  %334 = vmatprep.subr.mxu0 0.0
  %335 = vmatpush1.msra.mxu0 %v105
  %336 = vmatprep.subr.mxu0 0.0
  %337 = vmatpush1.msra.mxu0 %v106
  %338 = vmatprep.subr.mxu0 0.0
  %339 = vmatpush1.msra.mxu0 %v107
  %340 = vmatprep.subr.mxu0 0.0
  %341 = vmatpush1.msra.mxu0 %v108
  %342 = vmatprep.subr.mxu0 0.0
  %343 = vmatpush1.msra.mxu0 %v109
  %344 = vmatprep.subr.mxu0 0.0
  %345 = vmatpush1.msra.mxu0 %v110
  %346 = vmatprep.subr.mxu0 0.0
  %347 = vmatpush1.msra.mxu0 %v111
  %348 = vmatprep.subr.mxu0 0.0
  %349 = vmatpush1.msra.mxu0 %v112
  %350 = vmatprep.subr.mxu0 0.0
  %351 = vmatpush1.msra.mxu0 %v113
  %352 = vmatprep.subr.mxu0 0.0
  %353 = vmatpush1.msra.mxu0 %v114
  %354 = vmatprep.subr.mxu0 0.0
  %355 = vmatpush1.msra.mxu0 %v115
  %356 = vmatprep.subr.mxu0 0.0
  %357 = vmatpush1.msra.mxu0 %v116
  %358 = vmatprep.subr.mxu0 0.0
  %359 = vmatpush1.msra.mxu0 %v117
  %360 = vmatprep.subr.mxu0 0.0
  %361 = vmatpush1.msra.mxu0 %v118
  %362 = vmatprep.subr.mxu0 0.0
  %363 = vmatpush1.msra.mxu0 %v119
  %364 = vmatprep.subr.mxu0 0.0
  %365 = vmatpush1.msra.mxu0 %v120
  %366 = vmatprep.subr.mxu0 0.0
  %367 = vmatpush1.msra.mxu0 %v121
  %368 = vmatprep.subr.mxu0 0.0
  %369 = vmatpush1.msra.mxu0 %v122
  %370 = vmatprep.subr.mxu0 0.0
  %371 = vmatpush1.msra.mxu0 %v123
  %372 = vmatprep.subr.mxu0 0.0
  %373 = vmatpush1.msra.mxu0 %v124
  %374 = vmatprep.subr.mxu0 0.0
  %375 = vmatpush1.msra.mxu0 %v125
  %376 = vmatprep.subr.mxu0 0.0
  %377 = vmatpush1.msra.mxu0 %v126
  %378 = vmatprep.subr.mxu0 0.0
  %379 = vmatpush1.msra.mxu0 %v127
  %380 = vmatprep.subr.mxu0 0.0
  %381 = vmatpush1.msra.mxu0 %v128
  %382 = vmatprep.mubr.f32.mxu0 %v22
  %383 = vmatmul.mubr.f32.gmra.mrb[0].mxu0 %v21
  %v384 = vpop.f32.mrb[0].mxu0
  %v385 = vadd.f32 %v310, %v384
  %v386 = vpop.f32.mrb[0].mxu0
  %387 = vmatprep.mubr.f32.mxu0 %v30
  %388 = vmatmul.mubr.f32.gmra.mrb[0].mxu0 %v29
  %v389 = vpop.f32.mrb[0].mxu0
  %v390 = vadd.f32 %v315, %v389
  %v391 = vpop.f32.mrb[0].mxu0
  %392 = vdwg.mxu0
  %393 = vmatprep.subr.mxu0 0.0
  %394 = vmatpush1.msra.mxu0 %v129
  %395 = vmatprep.subr.mxu0 0.0
  %396 = vmatpush1.msra.mxu0 %v130
  %397 = vmatprep.subr.mxu0 0.0
  %398 = vmatpush1.msra.mxu0 %v131
  %399 = vmatprep.subr.mxu0 0.0
  %400 = vmatpush1.msra.mxu0 %v132
  %401 = vmatprep.subr.mxu0 0.0
  %402 = vmatpush1.msra.mxu0 %v133
  %403 = vmatprep.subr.mxu0 0.0
  %404 = vmatpush1.msra.mxu0 %v134
  %405 = vmatprep.subr.mxu0 0.0
  %406 = vmatpush1.msra.mxu0 %v135
  %407 = vmatprep.subr.mxu0 0.0
  %408 = vmatpush1.msra.mxu0 %v136
  %409 = vmatprep.subr.mxu0 0.0
  %410 = vmatpush1.msra.mxu0 %v137
  %411 = vmatprep.subr.mxu0 0.0
  %412 = vmatpush1.msra.mxu0 %v138
  %413 = vmatprep.subr.mxu0 0.0
  %414 = vmatpush1.msra.mxu0 %v139
  %415 = vmatprep.subr.mxu0 0.0
  %416 = vmatpush1.msra.mxu0 %v140
  %417 = vmatprep.subr.mxu0 0.0
  %418 = vmatpush1.msra.mxu0 %v141
  %419 = vmatprep.subr.mxu0 0.0
  %420 = vmatpush1.msra.mxu0 %v142
  %421 = vmatprep.subr.mxu0 0.0
  %422 = vmatpush1.msra.mxu0 %v143
  %423 = vmatprep.subr.mxu0 0.0
  %424 = vmatpush1.msra.mxu0 %v144
  %425 = vmatprep.subr.mxu0 0.0
  %426 = vmatpush1.msra.mxu0 %v145
  %427 = vmatprep.subr.mxu0 0.0
  %428 = vmatpush1.msra.mxu0 %v146
  %429 = vmatprep.subr.mxu0 0.0
  %430 = vmatpush1.msra.mxu0 %v147
  %431 = vmatprep.subr.mxu0 0.0
  %432 = vmatpush1.msra.mxu0 %v148
  %433 = vmatprep.subr.mxu0 0.0
  %434 = vmatpush1.msra.mxu0 %v149
  %435 = vmatprep.subr.mxu0 0.0
  %436 = vmatpush1.msra.mxu0 %v150
  %437 = vmatprep.subr.mxu0 0.0
  %438 = vmatpush1.msra.mxu0 %v151
  %439 = vmatprep.subr.mxu0 0.0
  %440 = vmatpush1.msra.mxu0 %v152
  %441 = vmatprep.subr.mxu0 0.0
  %442 = vmatpush1.msra.mxu0 %v153
  %443 = vmatprep.subr.mxu0 0.0
  %444 = vmatpush1.msra.mxu0 %v154
  %445 = vmatprep.subr.mxu0 0.0
  %446 = vmatpush1.msra.mxu0 %v155
  %447 = vmatprep.subr.mxu0 0.0
  %448 = vmatpush1.msra.mxu0 %v156
  %449 = vmatprep.subr.mxu0 0.0
  %450 = vmatpush1.msra.mxu0 %v157
  %451 = vmatprep.subr.mxu0 0.0
  %452 = vmatpush1.msra.mxu0 %v158
  %453 = vmatprep.subr.mxu0 0.0
  %454 = vmatpush1.msra.mxu0 %v159
  %455 = vmatprep.subr.mxu0 0.0
  %456 = vmatpush1.msra.mxu0 %v160
  %457 = vmatprep.mubr.f32.mxu0 %v24
  %458 = vmatmul.mubr.f32.gmra.mrb[0].mxu0 %v23
  %v459 = vpop.f32.mrb[0].mxu0
  %v460 = vadd.f32 %v385, %v459
  %v461 = vpop.f32.mrb[0].mxu0
  %462 = vmatprep.mubr.f32.mxu0 %v32
  %463 = vmatmul.mubr.f32.gmra.mrb[0].mxu0 %v31
  %v464 = vpop.f32.mrb[0].mxu0
  %v465 = vadd.f32 %v390, %v464
  %v466 = vpop.f32.mrb[0].mxu0
  %467 = vdwg.mxu0
  %v468 = vld [vmem:[%s3] sm:$0xff]
  %v469 = vld [vmem:[%s3 + $0x8] sm:$0xff]
  %v470 = vld [vmem:[%s3 + $0x10] sm:$0xff]
  %v471 = vld [vmem:[%s3 + $0x18] sm:$0xff]
  %v472 = vtanh.pop %v460
  %vm473 = vcmask 261120
  %v475 = vsel %vm473, %v472, 0
  %477 = vmatprep.subr.mxu0 0.0
  %478 = vmatpush1.msra.mxu0 %v468
  %479 = vmatprep.subr.mxu0 0.0
  %480 = vmatpush1.msra.mxu0 %v469
  %481 = vmatprep.subr.mxu0 0.0
  %482 = vmatpush1.msra.mxu0 %v470
  %483 = vmatprep.subr.mxu0 0.0
  %484 = vmatpush1.msra.mxu0 %v471
  %485 = vmatprep.subr.mxu0 0.0
  %486 = vmatpush1.msra.mxu0 0.0
  %487 = vmatprep.subr.mxu0 0.0
  %488 = vmatpush1.msra.mxu0 0.0
  %489 = vmatprep.subr.mxu0 0.0
  %490 = vmatpush1.msra.mxu0 0.0
  %491 = vmatprep.subr.mxu0 0.0
  %492 = vmatpush1.msra.mxu0 0.0
  %493 = vmatprep.subr.mxu0 0.0
  %494 = vmatpush1.msra.mxu0 0.0
  %495 = vmatprep.subr.mxu0 0.0
  %496 = vmatpush1.msra.mxu0 0.0
  %497 = vmatprep.subr.mxu0 0.0
  %498 = vmatpush1.msra.mxu0 0.0
  %499 = vmatprep.subr.mxu0 0.0
  %500 = vmatpush1.msra.mxu0 0.0
  %501 = vmatprep.subr.mxu0 0.0
  %502 = vmatpush1.msra.mxu0 0.0
  %503 = vmatprep.subr.mxu0 0.0
  %504 = vmatpush1.msra.mxu0 0.0
  %505 = vmatprep.subr.mxu0 0.0
  %506 = vmatpush1.msra.mxu0 0.0
  %507 = vmatprep.subr.mxu0 0.0
  %508 = vmatpush1.msra.mxu0 0.0
  %509 = vmatprep.subr.mxu0 0.0
  %510 = vmatpush1.msra.mxu0 0.0
  %511 = vmatprep.subr.mxu0 0.0
  %512 = vmatpush1.msra.mxu0 0.0
  %513 = vmatprep.subr.mxu0 0.0
  %514 = vmatpush1.msra.mxu0 0.0
  %515 = vmatprep.subr.mxu0 0.0
  %516 = vmatpush1.msra.mxu0 0.0
  %517 = vmatprep.subr.mxu0 0.0
  %518 = vmatpush1.msra.mxu0 0.0
  %519 = vmatprep.subr.mxu0 0.0
  %520 = vmatpush1.msra.mxu0 0.0
  %521 = vmatprep.subr.mxu0 0.0
  %522 = vmatpush1.msra.mxu0 0.0
  %523 = vmatprep.subr.mxu0 0.0
  %524 = vmatpush1.msra.mxu0 0.0
  %525 = vmatprep.subr.mxu0 0.0
  %526 = vmatpush1.msra.mxu0 0.0
  %527 = vmatprep.subr.mxu0 0.0
  %528 = vmatpush1.msra.mxu0 0.0
  %529 = vmatprep.subr.mxu0 0.0
  %530 = vmatpush1.msra.mxu0 0.0
  %531 = vmatprep.subr.mxu0 0.0
  %532 = vmatpush1.msra.mxu0 0.0
  %533 = vmatprep.subr.mxu0 0.0
  %534 = vmatpush1.msra.mxu0 0.0
  %535 = vmatprep.subr.mxu0 0.0
  %536 = vmatpush1.msra.mxu0 0.0
  %537 = vmatprep.subr.mxu0 0.0
  %538 = vmatpush1.msra.mxu0 0.0
  %539 = vmatprep.subr.mxu0 0.0
  %540 = vmatpush1.msra.mxu0 0.0
  %541 = vmatprep.mubr.f32.mxu0 0.0
  %542 = vmatmul.mubr.f32.gmra.mrb[0].mxu0 %v475
  %v543 = vpop.f32.mrb[0].mxu0
  %v544 = vadd.f32 0.0, %v543
  %v545 = vpop.f32.mrb[0].mxu0
  %546 = vdwg.mxu0
  %v548 = vrot.slane %v544, 6
  %v550 = vadd.f32 %v460, %v548
  %v551 = vtanh.pop %v550
  %v553 = vrot.slane %v551, 2
  %v554 = vsel %vm473, %v553, 0
  %556 = vmatprep.subr.mxu0 0.0
  %557 = vmatpush1.msra.mxu0 %v468
  %558 = vmatprep.subr.mxu0 0.0
  %559 = vmatpush1.msra.mxu0 %v469
  %560 = vmatprep.subr.mxu0 0.0
  %561 = vmatpush1.msra.mxu0 %v470
  %562 = vmatprep.subr.mxu0 0.0
  %563 = vmatpush1.msra.mxu0 %v471
  %564 = vmatprep.subr.mxu0 0.0
  %565 = vmatpush1.msra.mxu0 0.0
  %566 = vmatprep.subr.mxu0 0.0
  %567 = vmatpush1.msra.mxu0 0.0
  %568 = vmatprep.subr.mxu0 0.0
  %569 = vmatpush1.msra.mxu0 0.0
  %570 = vmatprep.subr.mxu0 0.0
  %571 = vmatpush1.msra.mxu0 0.0
  %572 = vmatprep.subr.mxu0 0.0
  %573 = vmatpush1.msra.mxu0 0.0
  %574 = vmatprep.subr.mxu0 0.0
  %575 = vmatpush1.msra.mxu0 0.0
  %576 = vmatprep.subr.mxu0 0.0
  %577 = vmatpush1.msra.mxu0 0.0
  %578 = vmatprep.subr.mxu0 0.0
  %579 = vmatpush1.msra.mxu0 0.0
  %580 = vmatprep.subr.mxu0 0.0
  %581 = vmatpush1.msra.mxu0 0.0
  %582 = vmatprep.subr.mxu0 0.0
  %583 = vmatpush1.msra.mxu0 0.0
  %584 = vmatprep.subr.mxu0 0.0
  %585 = vmatpush1.msra.mxu0 0.0
  %586 = vmatprep.subr.mxu0 0.0
  %587 = vmatpush1.msra.mxu0 0.0
  %588 = vmatprep.subr.mxu0 0.0
  %589 = vmatpush1.msra.mxu0 0.0
  %590 = vmatprep.subr.mxu0 0.0
  %591 = vmatpush1.msra.mxu0 0.0
  %592 = vmatprep.subr.mxu0 0.0
  %593 = vmatpush1.msra.mxu0 0.0
  %594 = vmatprep.subr.mxu0 0.0
  %595 = vmatpush1.msra.mxu0 0.0
  %596 = vmatprep.subr.mxu0 0.0
  %597 = vmatpush1.msra.mxu0 0.0
  %598 = vmatprep.subr.mxu0 0.0
  %599 = vmatpush1.msra.mxu0 0.0
  %600 = vmatprep.subr.mxu0 0.0
  %601 = vmatpush1.msra.mxu0 0.0
  %602 = vmatprep.subr.mxu0 0.0
  %603 = vmatpush1.msra.mxu0 0.0
  %604 = vmatprep.subr.mxu0 0.0
  %605 = vmatpush1.msra.mxu0 0.0
  %606 = vmatprep.subr.mxu0 0.0
  %607 = vmatpush1.msra.mxu0 0.0
  %608 = vmatprep.subr.mxu0 0.0
  %609 = vmatpush1.msra.mxu0 0.0
  %610 = vmatprep.subr.mxu0 0.0
  %611 = vmatpush1.msra.mxu0 0.0
  %612 = vmatprep.subr.mxu0 0.0
  %613 = vmatpush1.msra.mxu0 0.0
  %614 = vmatprep.subr.mxu0 0.0
  %615 = vmatpush1.msra.mxu0 0.0
  %616 = vmatprep.subr.mxu0 0.0
  %617 = vmatpush1.msra.mxu0 0.0
  %618 = vmatprep.subr.mxu0 0.0
  %619 = vmatpush1.msra.mxu0 0.0
  %620 = vmatprep.mubr.f32.mxu0 0.0
  %621 = vmatmul.mubr.f32.gmra.mrb[0].mxu0 %v554
  %v622 = vpop.f32.mrb[0].mxu0
  %v623 = vadd.f32 0.0, %v622
  %v624 = vpop.f32.mrb[0].mxu0
  %625 = vdwg.mxu0
  %v627 = vrot.slane %v623, 4
  %v629 = vadd.f32 %v460, %v627
  %v630 = vtanh.pop %v629
  %v632 = vrot.slane %v630, 4
  %v633 = vsel %vm473, %v632, 0
  %635 = vmatprep.subr.mxu0 0.0
  %636 = vmatpush1.msra.mxu0 %v468
  %637 = vmatprep.subr.mxu0 0.0
  %638 = vmatpush1.msra.mxu0 %v469
  %639 = vmatprep.subr.mxu0 0.0
  %640 = vmatpush1.msra.mxu0 %v470
  %641 = vmatprep.subr.mxu0 0.0
  %642 = vmatpush1.msra.mxu0 %v471
  %643 = vmatprep.subr.mxu0 0.0
  %644 = vmatpush1.msra.mxu0 0.0
  %645 = vmatprep.subr.mxu0 0.0
  %646 = vmatpush1.msra.mxu0 0.0
  %647 = vmatprep.subr.mxu0 0.0
  %648 = vmatpush1.msra.mxu0 0.0
  %649 = vmatprep.subr.mxu0 0.0
  %650 = vmatpush1.msra.mxu0 0.0
  %651 = vmatprep.subr.mxu0 0.0
  %652 = vmatpush1.msra.mxu0 0.0
  %653 = vmatprep.subr.mxu0 0.0
  %654 = vmatpush1.msra.mxu0 0.0
  %655 = vmatprep.subr.mxu0 0.0
  %656 = vmatpush1.msra.mxu0 0.0
  %657 = vmatprep.subr.mxu0 0.0
  %658 = vmatpush1.msra.mxu0 0.0
  %659 = vmatprep.subr.mxu0 0.0
  %660 = vmatpush1.msra.mxu0 0.0
  %661 = vmatprep.subr.mxu0 0.0
  %662 = vmatpush1.msra.mxu0 0.0
  %663 = vmatprep.subr.mxu0 0.0
  %664 = vmatpush1.msra.mxu0 0.0
  %665 = vmatprep.subr.mxu0 0.0
  %666 = vmatpush1.msra.mxu0 0.0
  %667 = vmatprep.subr.mxu0 0.0
  %668 = vmatpush1.msra.mxu0 0.0
  %669 = vmatprep.subr.mxu0 0.0
  %670 = vmatpush1.msra.mxu0 0.0
  %671 = vmatprep.subr.mxu0 0.0
  %672 = vmatpush1.msra.mxu0 0.0
  %673 = vmatprep.subr.mxu0 0.0
  %674 = vmatpush1.msra.mxu0 0.0
  %675 = vmatprep.subr.mxu0 0.0
  %676 = vmatpush1.msra.mxu0 0.0
  %677 = vmatprep.subr.mxu0 0.0
  %678 = vmatpush1.msra.mxu0 0.0
  %679 = vmatprep.subr.mxu0 0.0
  %680 = vmatpush1.msra.mxu0 0.0
  %681 = vmatprep.subr.mxu0 0.0
  %682 = vmatpush1.msra.mxu0 0.0
  %683 = vmatprep.subr.mxu0 0.0
  %684 = vmatpush1.msra.mxu0 0.0
  %685 = vmatprep.subr.mxu0 0.0
  %686 = vmatpush1.msra.mxu0 0.0
  %687 = vmatprep.subr.mxu0 0.0
  %688 = vmatpush1.msra.mxu0 0.0
  %689 = vmatprep.subr.mxu0 0.0
  %690 = vmatpush1.msra.mxu0 0.0
  %691 = vmatprep.subr.mxu0 0.0
  %692 = vmatpush1.msra.mxu0 0.0
  %693 = vmatprep.subr.mxu0 0.0
  %694 = vmatpush1.msra.mxu0 0.0
  %695 = vmatprep.subr.mxu0 0.0
  %696 = vmatpush1.msra.mxu0 0.0
  %697 = vmatprep.subr.mxu0 0.0
  %698 = vmatpush1.msra.mxu0 0.0
  %699 = vmatprep.mubr.f32.mxu0 0.0
  %700 = vmatmul.mubr.f32.gmra.mrb[0].mxu0 %v633
  %v701 = vpop.f32.mrb[0].mxu0
  %v702 = vadd.f32 0.0, %v701
  %v703 = vpop.f32.mrb[0].mxu0
  %704 = vdwg.mxu0
  %v706 = vrot.slane %v702, 2
  %v708 = vadd.f32 %v460, %v706
  %v709 = vtanh.pop %v708
  %v711 = vrot.slane %v709, 6
  %v712 = vsel %vm473, %v711, 0
  %714 = vmatprep.subr.mxu0 0.0
  %715 = vmatpush1.msra.mxu0 %v468
  %716 = vmatprep.subr.mxu0 0.0
  %717 = vmatpush1.msra.mxu0 %v469
  %718 = vmatprep.subr.mxu0 0.0
  %719 = vmatpush1.msra.mxu0 %v470
  %720 = vmatprep.subr.mxu0 0.0
  %721 = vmatpush1.msra.mxu0 %v471
  %722 = vmatprep.subr.mxu0 0.0
  %723 = vmatpush1.msra.mxu0 0.0
  %724 = vmatprep.subr.mxu0 0.0
  %725 = vmatpush1.msra.mxu0 0.0
  %726 = vmatprep.subr.mxu0 0.0
  %727 = vmatpush1.msra.mxu0 0.0
  %728 = vmatprep.subr.mxu0 0.0
  %729 = vmatpush1.msra.mxu0 0.0
  %730 = vmatprep.subr.mxu0 0.0
  %731 = vmatpush1.msra.mxu0 0.0
  %732 = vmatprep.subr.mxu0 0.0
  %733 = vmatpush1.msra.mxu0 0.0
  %734 = vmatprep.subr.mxu0 0.0
  %735 = vmatpush1.msra.mxu0 0.0
  %736 = vmatprep.subr.mxu0 0.0
  %737 = vmatpush1.msra.mxu0 0.0
  %738 = vmatprep.subr.mxu0 0.0
  %739 = vmatpush1.msra.mxu0 0.0
  %740 = vmatprep.subr.mxu0 0.0
  %741 = vmatpush1.msra.mxu0 0.0
  %742 = vmatprep.subr.mxu0 0.0
  %743 = vmatpush1.msra.mxu0 0.0
  %744 = vmatprep.subr.mxu0 0.0
  %745 = vmatpush1.msra.mxu0 0.0
  %746 = vmatprep.subr.mxu0 0.0
  %747 = vmatpush1.msra.mxu0 0.0
  %748 = vmatprep.subr.mxu0 0.0
  %749 = vmatpush1.msra.mxu0 0.0
  %750 = vmatprep.subr.mxu0 0.0
  %751 = vmatpush1.msra.mxu0 0.0
  %752 = vmatprep.subr.mxu0 0.0
  %753 = vmatpush1.msra.mxu0 0.0
  %754 = vmatprep.subr.mxu0 0.0
  %755 = vmatpush1.msra.mxu0 0.0
  %756 = vmatprep.subr.mxu0 0.0
  %757 = vmatpush1.msra.mxu0 0.0
  %758 = vmatprep.subr.mxu0 0.0
  %759 = vmatpush1.msra.mxu0 0.0
  %760 = vmatprep.subr.mxu0 0.0
  %761 = vmatpush1.msra.mxu0 0.0
  %762 = vmatprep.subr.mxu0 0.0
  %763 = vmatpush1.msra.mxu0 0.0
  %764 = vmatprep.subr.mxu0 0.0
  %765 = vmatpush1.msra.mxu0 0.0
  %766 = vmatprep.subr.mxu0 0.0
  %767 = vmatpush1.msra.mxu0 0.0
  %768 = vmatprep.subr.mxu0 0.0
  %769 = vmatpush1.msra.mxu0 0.0
  %770 = vmatprep.subr.mxu0 0.0
  %771 = vmatpush1.msra.mxu0 0.0
  %772 = vmatprep.subr.mxu0 0.0
  %773 = vmatpush1.msra.mxu0 0.0
  %774 = vmatprep.subr.mxu0 0.0
  %775 = vmatpush1.msra.mxu0 0.0
  %776 = vmatprep.subr.mxu0 0.0
  %777 = vmatpush1.msra.mxu0 0.0
  %778 = vmatprep.mubr.f32.mxu0 0.0
  %779 = vmatmul.mubr.f32.gmra.mrb[0].mxu0 %v712
  %v780 = vpop.f32.mrb[0].mxu0
  %v781 = vadd.f32 0.0, %v780
  %v782 = vpop.f32.mrb[0].mxu0
  %783 = vdwg.mxu0
  %v784 = vadd.f32 %v465, %v781
  %v785 = vtanh.pop %v784
  %v787 = vsel %vm473, %v785, 0
  %789 = vmatprep.subr.mxu0 0.0
  %790 = vmatpush1.msra.mxu0 %v468
  %791 = vmatprep.subr.mxu0 0.0
  %792 = vmatpush1.msra.mxu0 %v469
  %793 = vmatprep.subr.mxu0 0.0
  %794 = vmatpush1.msra.mxu0 %v470
  %795 = vmatprep.subr.mxu0 0.0
  %796 = vmatpush1.msra.mxu0 %v471
  %797 = vmatprep.subr.mxu0 0.0
  %798 = vmatpush1.msra.mxu0 0.0
  %799 = vmatprep.subr.mxu0 0.0
  %800 = vmatpush1.msra.mxu0 0.0
  %801 = vmatprep.subr.mxu0 0.0
  %802 = vmatpush1.msra.mxu0 0.0
  %803 = vmatprep.subr.mxu0 0.0
  %804 = vmatpush1.msra.mxu0 0.0
  %805 = vmatprep.subr.mxu0 0.0
  %806 = vmatpush1.msra.mxu0 0.0
  %807 = vmatprep.subr.mxu0 0.0
  %808 = vmatpush1.msra.mxu0 0.0
  %809 = vmatprep.subr.mxu0 0.0
  %810 = vmatpush1.msra.mxu0 0.0
  %811 = vmatprep.subr.mxu0 0.0
  %812 = vmatpush1.msra.mxu0 0.0
  %813 = vmatprep.subr.mxu0 0.0
  %814 = vmatpush1.msra.mxu0 0.0
  %815 = vmatprep.subr.mxu0 0.0
  %816 = vmatpush1.msra.mxu0 0.0
  %817 = vmatprep.subr.mxu0 0.0
  %818 = vmatpush1.msra.mxu0 0.0
  %819 = vmatprep.subr.mxu0 0.0
  %820 = vmatpush1.msra.mxu0 0.0
  %821 = vmatprep.subr.mxu0 0.0
  %822 = vmatpush1.msra.mxu0 0.0
  %823 = vmatprep.subr.mxu0 0.0
  %824 = vmatpush1.msra.mxu0 0.0
  %825 = vmatprep.subr.mxu0 0.0
  %826 = vmatpush1.msra.mxu0 0.0
  %827 = vmatprep.subr.mxu0 0.0
  %828 = vmatpush1.msra.mxu0 0.0
  %829 = vmatprep.subr.mxu0 0.0
  %830 = vmatpush1.msra.mxu0 0.0
  %831 = vmatprep.subr.mxu0 0.0
  %832 = vmatpush1.msra.mxu0 0.0
  %833 = vmatprep.subr.mxu0 0.0
  %834 = vmatpush1.msra.mxu0 0.0
  %835 = vmatprep.subr.mxu0 0.0
  %836 = vmatpush1.msra.mxu0 0.0
  %837 = vmatprep.subr.mxu0 0.0
  %838 = vmatpush1.msra.mxu0 0.0
  %839 = vmatprep.subr.mxu0 0.0
  %840 = vmatpush1.msra.mxu0 0.0
  %841 = vmatprep.subr.mxu0 0.0
  %842 = vmatpush1.msra.mxu0 0.0
  %843 = vmatprep.subr.mxu0 0.0
  %844 = vmatpush1.msra.mxu0 0.0
  %845 = vmatprep.subr.mxu0 0.0
  %846 = vmatpush1.msra.mxu0 0.0
  %847 = vmatprep.subr.mxu0 0.0
  %848 = vmatpush1.msra.mxu0 0.0
  %849 = vmatprep.subr.mxu0 0.0
  %850 = vmatpush1.msra.mxu0 0.0
  %851 = vmatprep.subr.mxu0 0.0
  %852 = vmatpush1.msra.mxu0 0.0
  %853 = vmatprep.mubr.f32.mxu0 0.0
  %854 = vmatmul.mubr.f32.gmra.mrb[0].mxu0 %v787
  %v855 = vpop.f32.mrb[0].mxu0
  %v856 = vadd.f32 0.0, %v855
  %v857 = vpop.f32.mrb[0].mxu0
  %858 = vdwg.mxu0
  %v860 = vrot.slane %v856, 6
  %v862 = vadd.f32 %v465, %v860
  %v863 = vtanh.pop %v862
  %v865 = vrot.slane %v863, 2
  %v866 = vsel %vm473, %v865, 0
  %868 = vmatprep.subr.mxu0 0.0
  %869 = vmatpush1.msra.mxu0 %v468
  %870 = vmatprep.subr.mxu0 0.0
  %871 = vmatpush1.msra.mxu0 %v469
  %872 = vmatprep.subr.mxu0 0.0
  %873 = vmatpush1.msra.mxu0 %v470
  %874 = vmatprep.subr.mxu0 0.0
  %875 = vmatpush1.msra.mxu0 %v471
  %876 = vmatprep.subr.mxu0 0.0
  %877 = vmatpush1.msra.mxu0 0.0
  %878 = vmatprep.subr.mxu0 0.0
  %879 = vmatpush1.msra.mxu0 0.0
  %880 = vmatprep.subr.mxu0 0.0
  %881 = vmatpush1.msra.mxu0 0.0
  %882 = vmatprep.subr.mxu0 0.0
  %883 = vmatpush1.msra.mxu0 0.0
  %884 = vmatprep.subr.mxu0 0.0
  %885 = vmatpush1.msra.mxu0 0.0
  %886 = vmatprep.subr.mxu0 0.0
  %887 = vmatpush1.msra.mxu0 0.0
  %888 = vmatprep.subr.mxu0 0.0
  %889 = vmatpush1.msra.mxu0 0.0
  %890 = vmatprep.subr.mxu0 0.0
  %891 = vmatpush1.msra.mxu0 0.0
  %892 = vmatprep.subr.mxu0 0.0
  %893 = vmatpush1.msra.mxu0 0.0
  %894 = vmatprep.subr.mxu0 0.0
  %895 = vmatpush1.msra.mxu0 0.0
  %896 = vmatprep.subr.mxu0 0.0
  %897 = vmatpush1.msra.mxu0 0.0
  %898 = vmatprep.subr.mxu0 0.0
  %899 = vmatpush1.msra.mxu0 0.0
  %900 = vmatprep.subr.mxu0 0.0
  %901 = vmatpush1.msra.mxu0 0.0
  %902 = vmatprep.subr.mxu0 0.0
  %903 = vmatpush1.msra.mxu0 0.0
  %904 = vmatprep.subr.mxu0 0.0
  %905 = vmatpush1.msra.mxu0 0.0
  %906 = vmatprep.subr.mxu0 0.0
  %907 = vmatpush1.msra.mxu0 0.0
  %908 = vmatprep.subr.mxu0 0.0
  %909 = vmatpush1.msra.mxu0 0.0
  %910 = vmatprep.subr.mxu0 0.0
  %911 = vmatpush1.msra.mxu0 0.0
  %912 = vmatprep.subr.mxu0 0.0
  %913 = vmatpush1.msra.mxu0 0.0
  %914 = vmatprep.subr.mxu0 0.0
  %915 = vmatpush1.msra.mxu0 0.0
  %916 = vmatprep.subr.mxu0 0.0
  %917 = vmatpush1.msra.mxu0 0.0
  %918 = vmatprep.subr.mxu0 0.0
  %919 = vmatpush1.msra.mxu0 0.0
  %920 = vmatprep.subr.mxu0 0.0
  %921 = vmatpush1.msra.mxu0 0.0
  %922 = vmatprep.subr.mxu0 0.0
  %923 = vmatpush1.msra.mxu0 0.0
  %924 = vmatprep.subr.mxu0 0.0
  %925 = vmatpush1.msra.mxu0 0.0
  %926 = vmatprep.subr.mxu0 0.0
  %927 = vmatpush1.msra.mxu0 0.0
  %928 = vmatprep.subr.mxu0 0.0
  %929 = vmatpush1.msra.mxu0 0.0
  %930 = vmatprep.subr.mxu0 0.0
  %931 = vmatpush1.msra.mxu0 0.0
  %932 = vmatprep.mubr.f32.mxu0 0.0
  %933 = vmatmul.mubr.f32.gmra.mrb[0].mxu0 %v866
  %v934 = vpop.f32.mrb[0].mxu0
  %v935 = vadd.f32 0.0, %v934
  %v936 = vpop.f32.mrb[0].mxu0
  %937 = vdwg.mxu0
  %v939 = vrot.slane %v935, 4
  %v941 = vadd.f32 %v465, %v939
  %v942 = vtanh.pop %v941
  %v944 = vrot.slane %v942, 4
  %v945 = vsel %vm473, %v944, 0
  %947 = vmatprep.subr.mxu0 0.0
  %948 = vmatpush1.msra.mxu0 %v468
  %949 = vmatprep.subr.mxu0 0.0
  %950 = vmatpush1.msra.mxu0 %v469
  %951 = vmatprep.subr.mxu0 0.0
  %952 = vmatpush1.msra.mxu0 %v470
  %953 = vmatprep.subr.mxu0 0.0
  %954 = vmatpush1.msra.mxu0 %v471
  %955 = vmatprep.subr.mxu0 0.0
  %956 = vmatpush1.msra.mxu0 0.0
  %957 = vmatprep.subr.mxu0 0.0
  %958 = vmatpush1.msra.mxu0 0.0
  %959 = vmatprep.subr.mxu0 0.0
  %960 = vmatpush1.msra.mxu0 0.0
  %961 = vmatprep.subr.mxu0 0.0
  %962 = vmatpush1.msra.mxu0 0.0
  %963 = vmatprep.subr.mxu0 0.0
  %964 = vmatpush1.msra.mxu0 0.0
  %965 = vmatprep.subr.mxu0 0.0
  %966 = vmatpush1.msra.mxu0 0.0
  %967 = vmatprep.subr.mxu0 0.0
  %968 = vmatpush1.msra.mxu0 0.0
  %969 = vmatprep.subr.mxu0 0.0
  %970 = vmatpush1.msra.mxu0 0.0
  %971 = vmatprep.subr.mxu0 0.0
  %972 = vmatpush1.msra.mxu0 0.0
  %973 = vmatprep.subr.mxu0 0.0
  %974 = vmatpush1.msra.mxu0 0.0
  %975 = vmatprep.subr.mxu0 0.0
  %976 = vmatpush1.msra.mxu0 0.0
  %977 = vmatprep.subr.mxu0 0.0
  %978 = vmatpush1.msra.mxu0 0.0
  %979 = vmatprep.subr.mxu0 0.0
  %980 = vmatpush1.msra.mxu0 0.0
  %981 = vmatprep.subr.mxu0 0.0
  %982 = vmatpush1.msra.mxu0 0.0
  %983 = vmatprep.subr.mxu0 0.0
  %984 = vmatpush1.msra.mxu0 0.0
  %985 = vmatprep.subr.mxu0 0.0
  %986 = vmatpush1.msra.mxu0 0.0
  %987 = vmatprep.subr.mxu0 0.0
  %988 = vmatpush1.msra.mxu0 0.0
  %989 = vmatprep.subr.mxu0 0.0
  %990 = vmatpush1.msra.mxu0 0.0
  %991 = vmatprep.subr.mxu0 0.0
  %992 = vmatpush1.msra.mxu0 0.0
  %993 = vmatprep.subr.mxu0 0.0
  %994 = vmatpush1.msra.mxu0 0.0
  %995 = vmatprep.subr.mxu0 0.0
  %996 = vmatpush1.msra.mxu0 0.0
  %997 = vmatprep.subr.mxu0 0.0
  %998 = vmatpush1.msra.mxu0 0.0
  %999 = vmatprep.subr.mxu0 0.0
  %1000 = vmatpush1.msra.mxu0 0.0
  %1001 = vmatprep.subr.mxu0 0.0
  %1002 = vmatpush1.msra.mxu0 0.0
  %1003 = vmatprep.subr.mxu0 0.0
  %1004 = vmatpush1.msra.mxu0 0.0
  %1005 = vmatprep.subr.mxu0 0.0
  %1006 = vmatpush1.msra.mxu0 0.0
  %1007 = vmatprep.subr.mxu0 0.0
  %1008 = vmatpush1.msra.mxu0 0.0
  %1009 = vmatprep.subr.mxu0 0.0
  %1010 = vmatpush1.msra.mxu0 0.0
  %1011 = vmatprep.mubr.f32.mxu0 0.0
  %1012 = vmatmul.mubr.f32.gmra.mrb[0].mxu0 %v945
  %v1013 = vpop.f32.mrb[0].mxu0
  %v1014 = vadd.f32 0.0, %v1013
  %v1015 = vpop.f32.mrb[0].mxu0
  %1016 = vdwg.mxu0
  %v1018 = vrot.slane %v1014, 2
  %v1020 = vadd.f32 %v465, %v1018
  %v1021 = vtanh.pop %v1020
  %1022 = vrot.lane.b32.xlu0 %v553, 32
  %v1023 = vpop.permute.xlu0 %1022
  %1025 = vrot.lane.b32.xlu0 %v632, 64
  %v1026 = vpop.permute.xlu0 %1025
  %1028 = vrot.lane.b32.xlu0 %v711, 96
  %v1029 = vpop.permute.xlu0 %1028
  %1031 = vrot.lane.b32.xlu0 %v865, 32
  %v1032 = vpop.permute.xlu0 %1031
  %1034 = vrot.lane.b32.xlu0 %v944, 64
  %v1035 = vpop.permute.xlu0 %1034
  %v1038 = vrot.slane %v1021, 6
  %1039 = vrot.lane.b32.xlu0 %v1038, 96
  %v1040 = vpop.permute.xlu0 %1039
  %v1042 = vsel %vm473, %v472, %v1023
  %vm1043 = vcmask 523264
  %v1044 = vsel %vm1043, %v1042, %v1026
  %vm1045 = vcmask 785408
  %v1046 = vsel %vm1045, %v1044, %v1029
  %v1047 = vsel %vm473, %v785, %v1032
  %v1048 = vsel %vm1043, %v1047, %v1035
  %v1049 = vsel %vm1045, %v1048, %v1040
  %v1052 = vcombine.low %v1046, %v1049
  %v1054 = vunpack.c.l.s4 1983009808
  %v1055 = vunpack.c.0.s8 %v1054
  %v1056 = vlaneseq
  %v1057 = vshrl.u32 %v1056, 7
  %v1058 = vsub.s32 %v1055, %v1057
  %v1059 = vrot.slane %v1052, %v1058
  %1061 = vst [vmem:[%s4] sm:$0xf] %v1059
  // Predicated region
  $region18: #{rcnn_forward.1} parent=0 // pred_check
    _
  $region19: #{rcnn_forward.1} parent=0 // pred_check_branch
    %1063 = sbr.rel (0) target = $region21
  $region20: #{rcnn_forward.1} parent=0 // pred_region
    _
  $region21: #{rcnn_forward.1} parent=0 // pred_fallthru
    _
  // Predicated region
  $region22: #{rcnn_forward.1} parent=0 // pred_check
    _
  $region23: #{rcnn_forward.1} parent=0 // pred_check_branch
    %1065 = sbr.rel (0) target = $region25
  $region24: #{rcnn_forward.1} parent=0 // pred_region
    _
  $region25: #{rcnn_forward.1} parent=0 // pred_fallthru
    _

</llo_original>
